<compile_context>
chip_gen: v5e
topology: v5e:2x2
jax: 0.10.0
libtpu: 0.0.40
codegen_flags: <defaults>
</compile_context>

<pallas_src>
import numpy as np
import jax
import jax.numpy as jnp
from jax.experimental import pallas as pl
from jax.experimental.pallas import tpu as pltpu


# ----------------------------- small helpers --------------------------------

def _round_up(x, m):
    return ((x + m - 1) // m) * m


def _divisors_desc(n):
    return [d for d in range(n, 0, -1) if n % d == 0]


def _vmem_budget():
    """Per-grid-step VMEM budget and scoped-VMEM limit, chip aware."""
    mib = 1024 * 1024
    try:
        cap = int(pltpu.get_tpu_info().vmem_capacity_bytes)
    except Exception:
        cap = 64 * mib                    # v7x per-TensorCore VMEM (smallest)
    # v7x (64 MiB/TC): ~24 MiB per-step footprint, 56 MiB scoped limit.
    # v5e/v6e (128 MiB): ~40 MiB per-step footprint, 100 MiB scoped limit.
    budget = max(4 * mib, min(cap // 2 - 8 * mib, 40 * mib))
    limit = max(16 * mib, min(cap - 8 * mib, 100 * mib))
    return budget, limit


def _block_bytes(tb, tc, ni, no, in_itemsize):
    """Padding-aware VMEM footprint of one grid step.

    Rounds every block up to its (sublane, 128-lane) register tiling, doubles
    the pipelined blocks for Pallas double-buffering, and adds an estimate of
    the live f32 intermediates inside the kernel body.
    """
    lane = 128
    sub_in = 16 if in_itemsize == 2 else 8       # bf16 packs 16 sublanes/vreg
    sub32 = 8
    r = _round_up
    x_blk = tb * tc * r(ni, sub_in) * r(ni, lane) * in_itemsize
    w_blk = tc * r(ni, sub_in) * r(no, lane) * in_itemsize
    o_blk = tb * r(no, sub32) * r(tc * no, lane) * 4
    pipelined = 2 * (x_blk + w_blk + o_blk)      # Pallas double-buffers blocks
    interm = (tb * r(ni, sub_in) * lane * in_itemsize            # per-channel X slice
              + tb * (r(ni, sub32) + r(no, sub32)) * lane * 4    # t = X@W + transpose
              + tc * tb * r(no, sub32) * lane * 4                # tc results (concat)
              + tb * r(no, sub32) * r(tc * no, lane) * 4)        # packed slab value
    return pipelined + interm


def _choose_tiles(B, h, ni, no, in_itemsize, budget):
    """Pick (TB, TC) batch/channel block sizes.  ni/no are already padded."""

    def fits(tb, tc):
        return _block_bytes(tb, tc, ni, no, in_itemsize) <= budget

    # Channel block: prefer a lane-dense packed output (TC*no multiple of 128
    # lanes -> unmasked wide stores, dense HBM writeback); otherwise the
    # largest fitting divisor of h.  TC is capped so the statically unrolled
    # channel loop (all tc results live for the single wide store) stays small.
    max_tc = max(1, min(32, 512 // no))
    tc_cands = [d for d in _divisors_desc(h) if d <= max_tc and fits(1, d)] or [1]
    dense = [d for d in tc_cands if (d * no) % 128 == 0]
    TC = dense[0] if dense else tc_cands[0]

    # Batch block: largest divisor of B that fits the budget, but keep an even
    # (>= 2) number of steps on the "parallel" batch axis when splittable so
    # both of v7x's TensorCores get work.
    tb_cands = [d for d in _divisors_desc(B) if fits(d, TC)] or [1]
    TB = tb_cands[0]
    if B > 1:
        even = [d for d in tb_cands if (B // d) >= 2 and (B // d) % 2 == 0]
        some = [d for d in tb_cands if (B // d) >= 2]
        TB = even[0] if even else (some[0] if some else TB)
    elif h > 1 and h // TC == 1:
        # B == 1: expose parallelism on the channel axis instead.
        smaller = [d for d in tc_cands if d < h]
        if smaller:
            dense_s = [d for d in smaller if (d * no) % 128 == 0]
            TC = dense_s[0] if dense_s else smaller[0]
    return TB, TC


# ----------------------------- Pallas kernel --------------------------------

def _make_bimap_kernel(tb, tc, ni, no, packed):
    """P[b, c] = W[c].T @ X[b, c] @ W[c] for a (tb, tc) block, exact for any X."""

    def kernel(w_ref, x_ref, o_ref):
        # w_ref: (tc, ni, no)      x_ref: (tb, tc, ni, ni)
        # o_ref: (1, tb, no, tc*no) lane-packed slab, or (tb, tc, no, no).
        cols = []
        # Statically unrolled: all tc per-channel results must stay live for
        # the single lane-packed store below (a fori_loop would force the
        # narrow masked per-channel stores we are avoiding).  TC is capped in
        # _choose_tiles so this live set stays bounded.
        for c in range(tc):
            w = w_ref[c]                                     # (ni, no)
            x = x_ref[:, c]                                  # (tb, ni, ni)

            # GEMM 1, batch-stacked on the MXU rows: (tb*ni, ni) @ (ni, no).
            t = jnp.dot(x.reshape(tb * ni, ni), w,
                        preferred_element_type=jnp.float32)  # X @ W
            # GEMM 2, also batch-stacked: transpose t (XLU, cheap) and contract
            # its ni axis against W in a single (tb*no, ni) @ (ni, no) matmul.
            tt = jnp.swapaxes(t.reshape(tb, ni, no), 1, 2)   # (tb, no, ni)
            pt = jnp.dot(tt.reshape(tb * no, ni).astype(w.dtype), w,
                         preferred_element_type=jnp.float32)  # (XW)^T W = W^T X^T W
            # Transpose back so the result is exact for arbitrary X (the
            # original module does not require symmetry).  For SPD inputs this
            # tiny transpose could be elided (P is then symmetric).
            p = jnp.swapaxes(pt.reshape(tb, no, no), 1, 2)   # W^T X W

            if packed:
                cols.append(p)
            else:
                # `no` is a multiple of 128 here: stores are already lane-dense.
                o_ref[:, c] = p.astype(o_ref.dtype)
        if packed:
            slab = cols[0] if tc == 1 else jnp.concatenate(cols, axis=-1)
            o_ref[0] = slab.astype(o_ref.dtype)              # one wide store/step

    return kernel


def bimap_multiplication(X, W, *, compute_dtype=jnp.float32):
    """P[b, c] = W[c].T @ X[b, c] @ W[c] via a Pallas TPU kernel.

    X: (B, h, ni, ni), W: (h, ni, no); returns (B, h, no, no) float32.
    compute_dtype: dtype of the operands fed to the kernel/MXU.  float32 tracks
    the float64 PyTorch reference closely; bfloat16 halves X's HBM traffic
    (this kernel is memory bound) and is the recommended setting on v6e/v7x
    once accuracy is validated.  Accumulation is always float32.
    """
    B, h, ni, ni2 = X.shape
    hw, niw, no = W.shape
    assert ni2 == ni and hw == h and niw == ni, "shape mismatch"
    compute_dtype = jnp.dtype(compute_dtype)
    in_itemsize = compute_dtype.itemsize

    # Pad ni/no up to the sublane granule so the in-kernel batch-stacking
    # reshapes are relayout-free (exact: zero-padded W rows/cols contribute
    # nothing to W^T X W; the extra output rows/cols are sliced off below).
    ni_p = _round_up(ni, 16 if in_itemsize == 2 else 8)
    no_p = _round_up(no, 8)
    Xc = X.astype(compute_dtype)
    Wc = W.astype(compute_dtype)
    if ni_p != ni:
        Xc = jnp.pad(Xc, ((0, 0), (0, 0), (0, ni_p - ni), (0, ni_p - ni)))
        Wc = jnp.pad(Wc, ((0, 0), (0, ni_p - ni), (0, 0)))
    if no_p != no:
        Wc = jnp.pad(Wc, ((0, 0), (0, 0), (0, no_p - no)))

    budget, vmem_limit = _vmem_budget()
    TB, TC = _choose_tiles(B, h, ni_p, no_p, in_itemsize, budget)
    n_cblk, n_bblk = h // TC, B // TB

    # Lane-packed output slab unless `no` already spans a 128-lane multiple, in
    # which case the natural layout is lane-dense and the wrapper unpack (an
    # extra HBM read+write of the output) is skipped.
    packed = (no_p % 128) != 0
    if packed:
        out_shape = jax.ShapeDtypeStruct((n_cblk, B, no_p, TC * no_p), jnp.float32)
        out_specs = pl.BlockSpec((1, TB, no_p, TC * no_p),
                                 lambda c, b: (c, b, 0, 0))
    else:
        out_shape = jax.ShapeDtypeStruct((B, h, no_p, no_p), jnp.float32)
        out_specs = pl.BlockSpec((TB, TC, no_p, no_p),
                                 lambda c, b: (b, c, 0, 0))

    out = pl.pallas_call(
        _make_bimap_kernel(TB, TC, ni_p, no_p, packed),
        out_shape=out_shape,
        grid_spec=pltpu.PrefetchScalarGridSpec(
            num_scalar_prefetch=0,
            # Channel blocks outer, batch blocks inner: W's block index is
            # constant along the inner axis, so Pallas keeps W resident instead
            # of re-fetching it once per batch block.
            grid=(n_cblk, n_bblk),
            in_specs=[
                pl.BlockSpec((TC, ni_p, no_p), lambda c, b: (c, 0, 0)),
                pl.BlockSpec((TB, TC, ni_p, ni_p), lambda c, b: (b, c, 0, 0)),
            ],
            out_specs=out_specs,
        ),
        compiler_params=pltpu.CompilerParams(
            dimension_semantics=("parallel", "parallel"),
            vmem_limit_bytes=int(vmem_limit)),
    )(Wc, Xc)

    if packed:
        # Un-pack the lane-packed slab -> (B, h, no_p, no_p).  Pure layout
        # plumbing, done by XLA outside the kernel.
        out = out.reshape(n_cblk, B, no_p, TC, no_p)
        out = out.transpose(1, 0, 3, 2, 4).reshape(B, h, no_p, no_p)
    if no_p != no:
        out = out[:, :, :no, :no]
    return out


# --------------------------- BiMap module (JAX) -----------------------------

class BiMap:
    """JAX/Pallas port of TensorCSPNet's BiMap layer (forward only)."""

    def __init__(self, h, ni, no, key):
        self._h = h
        self._orig_ni, self._orig_no = ni, no
        self.increase_dim = no > ni
        if no <= ni:
            self._ni, self._no = ni, no
        else:
            self._ni, self._no = no, no
        self._W = self._init_bimap_parameter(key)

    def _init_bimap_parameter(self, key):
        # Stiefel-style init: orthonormal columns of SVD(v v^T), like PyTorch.
        # TODO(synk): SVD init is done host-side with numpy (parameter setup
        # only, not part of the forward pass).
        Ws = []
        for i in range(self._h):
            k = jax.random.fold_in(key, i)
            v = np.asarray(
                jax.random.uniform(k, (self._ni, self._ni), dtype=jnp.float32))
            u, _, _ = np.linalg.svd(v @ v.T)
            Ws.append(u[:, : self._no])
        return jnp.asarray(np.stack(Ws, axis=0), dtype=jnp.float32)  # (h, ni, no)

    def __call__(self, X, compute_dtype=jnp.float32):
        if not self.increase_dim:
            return bimap_multiplication(X, self._W, compute_dtype=compute_dtype)
        # SPDIncreaseDim folded in algebraically instead of padding X:
        #   P = W.T (E X E.T + D) W = W_top.T X W_top + W_bot.T W_bot
        # with W_top = W[:, :ni, :], W_bot = W[:, ni:, :].  Avoids inflating X
        # from (ni, ni) to (no, no) in HBM and in the matmuls.
        ni = self._orig_ni
        w_top = self._W[:, :ni, :]                           # (h, ni, no)
        w_bot = self._W[:, ni:, :]                           # (h, no-ni, no)
        const = jnp.einsum("cjp,cjq->cpq", w_bot, w_bot)     # (h, no, no)
        return (bimap_multiplication(X, w_top, compute_dtype=compute_dtype)
                + const[None, :, :, :].astype(jnp.float32))


# ------------------------------ reference -----------------------------------

_HI = jax.lax.Precision.HIGHEST


def spd_increase_dim_ref(X, ni, no):
    """Faithful SPDIncreaseDim reference: add + eye @ X @ eye.T."""
    eye = jnp.eye(no, ni, dtype=X.dtype)                     # (no, ni)
    add_diag = jnp.concatenate(
        [jnp.zeros((ni,), X.dtype), jnp.ones((no - ni,), X.dtype)])
    add = jnp.diag(add_diag)                                 # (no, no)
    out = jnp.einsum("pi,bcij,qj->bcpq", eye, X, eye, precision=_HI)
    return out + add[None, None, :, :]


def bimap_reference(X, W, increase_dim, ni, no):
    if increase_dim:
        X = spd_increase_dim_ref(X, ni, no)
    return jnp.einsum("cip,bcij,cjq->bcpq", W, X, W, precision=_HI)


# ------------------------------- main ---------------------------------------

if __name__ == "__main__":
    key = jax.random.PRNGKey(0)
    kx, kw1, kw2, kw3 = jax.random.split(key, 4)

    # Tolerances: the PyTorch reference is float64; the kernel runs f32 on the
    # MXU (whose f32 matmuls are built from bf16 passes), so a few-percent
    # relative tolerance is used.  Structural/semantic bugs produce O(value)
    # errors and are still caught decisively.
    F32_TOL = dict(rtol=2e-2, atol=5e-1)
    BF16_TOL = dict(rtol=5e-2, atol=1.0)

    # Case 1: no <= ni (plain bilinear map), f32.
    B, h, ni, no = 2, 4, 16, 8
    A = jax.random.normal(kx, (B, h, ni, ni), dtype=jnp.float32)
    X = jnp.einsum("bcij,bckj->bcik", A, A) + 1e-3 * jnp.eye(ni)[None, None]

    bimap1 = BiMap(h, ni, no, kw1)
    P1 = jax.block_until_ready(bimap1(X))
    ref1 = bimap_reference(X, bimap1._W, False, ni, no)
    assert P1.shape == (B, h, no, no)
    np.testing.assert_allclose(np.asarray(P1), np.asarray(ref1), **F32_TOL)

    # Case 2: no > ni (SPDIncreaseDim path, folded algebraically in __call__).
    ni2, no2 = 8, 16
    A2 = jax.random.normal(jax.random.fold_in(kx, 1), (B, h, ni2, ni2),
                           dtype=jnp.float32)
    X2 = jnp.einsum("bcij,bckj->bcik", A2, A2) + 1e-3 * jnp.eye(ni2)[None, None]
    bimap2 = BiMap(h, ni2, no2, kw2)
    P2 = jax.block_until_ready(bimap2(X2))
    ref2 = bimap_reference(X2, bimap2._W, True, ni2, no2)
    assert P2.shape == (B, h, no2, no2)
    np.testing.assert_allclose(np.asarray(P2), np.asarray(ref2), **F32_TOL)

    # Case 3: ni/no not multiples of 8 (typical EEG channel counts), exercises
    # the zero-padding path and a non-power-of-two channel count.
    h3, ni3, no3 = 3, 22, 10
    A3 = jax.random.normal(jax.random.fold_in(kx, 2), (B, h3, ni3, ni3),
                           dtype=jnp.float32)
    X3 = jnp.einsum("bcij,bckj->bcik", A3, A3) + 1e-3 * jnp.eye(ni3)[None, None]
    bimap3 = BiMap(h3, ni3, no3, kw3)
    P3 = jax.block_until_ready(bimap3(X3))
    ref3 = bimap_reference(X3, bimap3._W, False, ni3, no3)
    assert P3.shape == (B, h3, no3, no3)
    np.testing.assert_allclose(np.asarray(P3), np.asarray(ref3), **F32_TOL)

    # Case 4: optional bfloat16 operand path (halves X's HBM traffic on the
    # memory-bound kernel; recommended on v6e/v7x).  Accumulation stays f32.
    P1b = jax.block_until_ready(bimap1(X, compute_dtype=jnp.bfloat16))
    np.testing.assert_allclose(np.asarray(P1b), np.asarray(ref1), **BF16_TOL)

    print("KERNEL_OK")
</pallas_src>

<mosaic_0001>
module attributes {stable_mosaic.version = 11 : i64} {
  func.func @kernel(%arg0: i32, %arg1: i32, %arg2: memref<4x16x8xf32, #tpu.memory_space<vmem>>, %arg3: memref<1x4x16x16xf32, #tpu.memory_space<vmem>>, %arg4: memref<1x1x8x32xf32, #tpu.memory_space<vmem>>) attributes {dimension_semantics = [#tpu.dimension_semantics<parallel>, #tpu.dimension_semantics<parallel>], iteration_bounds = array<i64: 1, 2>, scalar_prefetch = 0 : i64, scratch_operands = 0 : i64, tpu.core_type = #tpu.core_type<tc>, window_params = [{transform_indices = @transform_0, window_bounds = array<i64: 4, 16, 8>}, {transform_indices = @transform_1, window_bounds = array<i64: 1, 4, 16, 16>}, {transform_indices = @transform_2, window_bounds = array<i64: 1, 1, 8, 32>}]} {
    %c0 = arith.constant 0 : index
    %c0_0 = arith.constant 0 : index
    %c0_1 = arith.constant 0 : index
    %0 = vector.load %arg2[%c0, %c0_0, %c0_1] : memref<4x16x8xf32, #tpu.memory_space<vmem>>, vector<1x16x8xf32>
    %1 = vector.shape_cast %0 : vector<1x16x8xf32> to vector<16x8xf32>
    %c0_2 = arith.constant 0 : index
    %c0_3 = arith.constant 0 : index
    %c0_4 = arith.constant 0 : index
    %c0_5 = arith.constant 0 : index
    %2 = vector.load %arg3[%c0_2, %c0_3, %c0_4, %c0_5] : memref<1x4x16x16xf32, #tpu.memory_space<vmem>>, vector<1x1x16x16xf32>
    %3 = vector.shape_cast %2 : vector<1x1x16x16xf32> to vector<1x16x16xf32>
    %4 = vector.shape_cast %3 : vector<1x16x16xf32> to vector<16x16xf32>
    %cst = arith.constant dense<0.000000e+00> : vector<16x8xf32>
    %5 = tpu.matmul %4, %1, %cst {dimension_numbers = #tpu.dot_dimension_numbers<[1], [0], [0], [1], [0, 0, 1, 1], [], []>} : vector<16x16xf32>, vector<16x8xf32>, vector<16x8xf32> -> vector<16x8xf32>
    %6 = vector.shape_cast %5 : vector<16x8xf32> to vector<1x16x8xf32>
    %7 = tpu.transpose %6, [0, 2, 1] : vector<1x16x8xf32> -> vector<1x8x16xf32>
    %8 = vector.shape_cast %7 : vector<1x8x16xf32> to vector<8x16xf32>
    %cst_6 = arith.constant dense<0.000000e+00> : vector<8x8xf32>
    %9 = tpu.matmul %8, %1, %cst_6 {dimension_numbers = #tpu.dot_dimension_numbers<[1], [0], [0], [1], [0, 0, 1, 1], [], []>} : vector<8x16xf32>, vector<16x8xf32>, vector<8x8xf32> -> vector<8x8xf32>
    %10 = vector.shape_cast %9 : vector<8x8xf32> to vector<1x8x8xf32>
    %11 = tpu.transpose %10, [0, 2, 1] : vector<1x8x8xf32> -> vector<1x8x8xf32>
    %c1 = arith.constant 1 : index
    %c0_7 = arith.constant 0 : index
    %c0_8 = arith.constant 0 : index
    %12 = vector.load %arg2[%c1, %c0_7, %c0_8] : memref<4x16x8xf32, #tpu.memory_space<vmem>>, vector<1x16x8xf32>
    %13 = vector.shape_cast %12 : vector<1x16x8xf32> to vector<16x8xf32>
    %c0_9 = arith.constant 0 : index
    %c1_10 = arith.constant 1 : index
    %c0_11 = arith.constant 0 : index
    %c0_12 = arith.constant 0 : index
    %14 = vector.load %arg3[%c0_9, %c1_10, %c0_11, %c0_12] : memref<1x4x16x16xf32, #tpu.memory_space<vmem>>, vector<1x1x16x16xf32>
    %15 = vector.shape_cast %14 : vector<1x1x16x16xf32> to vector<1x16x16xf32>
    %16 = vector.shape_cast %15 : vector<1x16x16xf32> to vector<16x16xf32>
    %cst_13 = arith.constant dense<0.000000e+00> : vector<16x8xf32>
    %17 = tpu.matmul %16, %13, %cst_13 {dimension_numbers = #tpu.dot_dimension_numbers<[1], [0], [0], [1], [0, 0, 1, 1], [], []>} : vector<16x16xf32>, vector<16x8xf32>, vector<16x8xf32> -> vector<16x8xf32>
    %18 = vector.shape_cast %17 : vector<16x8xf32> to vector<1x16x8xf32>
    %19 = tpu.transpose %18, [0, 2, 1] : vector<1x16x8xf32> -> vector<1x8x16xf32>
    %20 = vector.shape_cast %19 : vector<1x8x16xf32> to vector<8x16xf32>
    %cst_14 = arith.constant dense<0.000000e+00> : vector<8x8xf32>
    %21 = tpu.matmul %20, %13, %cst_14 {dimension_numbers = #tpu.dot_dimension_numbers<[1], [0], [0], [1], [0, 0, 1, 1], [], []>} : vector<8x16xf32>, vector<16x8xf32>, vector<8x8xf32> -> vector<8x8xf32>
    %22 = vector.shape_cast %21 : vector<8x8xf32> to vector<1x8x8xf32>
    %23 = tpu.transpose %22, [0, 2, 1] : vector<1x8x8xf32> -> vector<1x8x8xf32>
    %c2 = arith.constant 2 : index
    %c0_15 = arith.constant 0 : index
    %c0_16 = arith.constant 0 : index
    %24 = vector.load %arg2[%c2, %c0_15, %c0_16] : memref<4x16x8xf32, #tpu.memory_space<vmem>>, vector<1x16x8xf32>
    %25 = vector.shape_cast %24 : vector<1x16x8xf32> to vector<16x8xf32>
    %c0_17 = arith.constant 0 : index
    %c2_18 = arith.constant 2 : index
    %c0_19 = arith.constant 0 : index
    %c0_20 = arith.constant 0 : index
    %26 = vector.load %arg3[%c0_17, %c2_18, %c0_19, %c0_20] : memref<1x4x16x16xf32, #tpu.memory_space<vmem>>, vector<1x1x16x16xf32>
    %27 = vector.shape_cast %26 : vector<1x1x16x16xf32> to vector<1x16x16xf32>
    %28 = vector.shape_cast %27 : vector<1x16x16xf32> to vector<16x16xf32>
    %cst_21 = arith.constant dense<0.000000e+00> : vector<16x8xf32>
    %29 = tpu.matmul %28, %25, %cst_21 {dimension_numbers = #tpu.dot_dimension_numbers<[1], [0], [0], [1], [0, 0, 1, 1], [], []>} : vector<16x16xf32>, vector<16x8xf32>, vector<16x8xf32> -> vector<16x8xf32>
    %30 = vector.shape_cast %29 : vector<16x8xf32> to vector<1x16x8xf32>
    %31 = tpu.transpose %30, [0, 2, 1] : vector<1x16x8xf32> -> vector<1x8x16xf32>
    %32 = vector.shape_cast %31 : vector<1x8x16xf32> to vector<8x16xf32>
    %cst_22 = arith.constant dense<0.000000e+00> : vector<8x8xf32>
    %33 = tpu.matmul %32, %25, %cst_22 {dimension_numbers = #tpu.dot_dimension_numbers<[1], [0], [0], [1], [0, 0, 1, 1], [], []>} : vector<8x16xf32>, vector<16x8xf32>, vector<8x8xf32> -> vector<8x8xf32>
    %34 = vector.shape_cast %33 : vector<8x8xf32> to vector<1x8x8xf32>
    %35 = tpu.transpose %34, [0, 2, 1] : vector<1x8x8xf32> -> vector<1x8x8xf32>
    %c3 = arith.constant 3 : index
    %c0_23 = arith.constant 0 : index
    %c0_24 = arith.constant 0 : index
    %36 = vector.load %arg2[%c3, %c0_23, %c0_24] : memref<4x16x8xf32, #tpu.memory_space<vmem>>, vector<1x16x8xf32>
    %37 = vector.shape_cast %36 : vector<1x16x8xf32> to vector<16x8xf32>
    %c0_25 = arith.constant 0 : index
    %c3_26 = arith.constant 3 : index
    %c0_27 = arith.constant 0 : index
    %c0_28 = arith.constant 0 : index
    %38 = vector.load %arg3[%c0_25, %c3_26, %c0_27, %c0_28] : memref<1x4x16x16xf32, #tpu.memory_space<vmem>>, vector<1x1x16x16xf32>
    %39 = vector.shape_cast %38 : vector<1x1x16x16xf32> to vector<1x16x16xf32>
    %40 = vector.shape_cast %39 : vector<1x16x16xf32> to vector<16x16xf32>
    %cst_29 = arith.constant dense<0.000000e+00> : vector<16x8xf32>
    %41 = tpu.matmul %40, %37, %cst_29 {dimension_numbers = #tpu.dot_dimension_numbers<[1], [0], [0], [1], [0, 0, 1, 1], [], []>} : vector<16x16xf32>, vector<16x8xf32>, vector<16x8xf32> -> vector<16x8xf32>
    %42 = vector.shape_cast %41 : vector<16x8xf32> to vector<1x16x8xf32>
    %43 = tpu.transpose %42, [0, 2, 1] : vector<1x16x8xf32> -> vector<1x8x16xf32>
    %44 = vector.shape_cast %43 : vector<1x8x16xf32> to vector<8x16xf32>
    %cst_30 = arith.constant dense<0.000000e+00> : vector<8x8xf32>
    %45 = tpu.matmul %44, %37, %cst_30 {dimension_numbers = #tpu.dot_dimension_numbers<[1], [0], [0], [1], [0, 0, 1, 1], [], []>} : vector<8x16xf32>, vector<16x8xf32>, vector<8x8xf32> -> vector<8x8xf32>
    %46 = vector.shape_cast %45 : vector<8x8xf32> to vector<1x8x8xf32>
    %47 = tpu.transpose %46, [0, 2, 1] : vector<1x8x8xf32> -> vector<1x8x8xf32>
    %48 = tpu.concatenate %11, %23, %35, %47 in 2 : vector<1x8x8xf32>, vector<1x8x8xf32>, vector<1x8x8xf32>, vector<1x8x8xf32> -> vector<1x8x32xf32>
    %c0_31 = arith.constant 0 : index
    %c0_32 = arith.constant 0 : index
    %c0_33 = arith.constant 0 : index
    %c0_34 = arith.constant 0 : index
    %49 = vector.load %arg4[%c0_31, %c0_32, %c0_33, %c0_34] : memref<1x1x8x32xf32, #tpu.memory_space<vmem>>, vector<1x1x8x32xf32>
    %50 = vector.shape_cast %49 : vector<1x1x8x32xf32> to vector<1x8x32xf32>
    %51 = vector.shape_cast %48 : vector<1x8x32xf32> to vector<1x1x8x32xf32>
    tpu.vector_store %arg4[%c0_31, %c0_32, %c0_33, %c0_34], %51 {strides = array<i32>} : memref<1x1x8x32xf32, #tpu.memory_space<vmem>>, vector<1x1x8x32xf32>,
    return
  }
  func.func @transform_0(%arg0: i32, %arg1: i32) -> (i32, i32, i32) {
    %c0_i32 = arith.constant 0 : i32
    %c0_i32_0 = arith.constant 0 : i32
    %c0_i32_1 = arith.constant 0 : i32
    return %arg0, %c0_i32, %c0_i32_0 : i32, i32, i32
  }
  func.func @transform_1(%arg0: i32, %arg1: i32) -> (i32, i32, i32, i32) {
    %c0_i32 = arith.constant 0 : i32
    %c0_i32_0 = arith.constant 0 : i32
    %c0_i32_1 = arith.constant 0 : i32
    return %arg1, %arg0, %c0_i32, %c0_i32_0 : i32, i32, i32, i32
  }
  func.func @transform_2(%arg0: i32, %arg1: i32) -> (i32, i32, i32, i32) {
    %c0_i32 = arith.constant 0 : i32
    %c0_i32_0 = arith.constant 0 : i32
    %c0_i32_1 = arith.constant 0 : i32
    return %arg0, %arg1, %c0_i32, %c0_i32_0 : i32, i32, i32, i32
  }
}

</mosaic_0001>

<llo_original>
// kernel: tpu_custom_call.1
$region0: #{tpu_custom_call.1}
  #allocation0 [shape = 'u32[]', space=smem, size = 0x4, offset = 0x4, fixed_abs, tag = 'smem constant byte address 0x4 - core index']
  #allocation1 [shape = 'u32[72,128]{1,0:T(1,128)}', space=vmem, size = 0x9000, scoped, tag = 'internal scratch']
  %s0 = inlined_call_operand.vmem [shape: f32[4,16,8], index: 0, kind: input, shape index: {}]
  %s1 = inlined_call_operand.hbm [shape: f32[2,4,16,16], index: 1, kind: input, shape index: {}]
  %s2 = inlined_call_operand.hbm [shape: f32[1,2,8,32], index: 2, kind: output, shape index: {}]
  %s3 = sld [smem:[#allocation0]]
  $region45: #{tpu_custom_call.1} parent=0
    _
  %s5 = ssub.s32 1, %s3
  %s6 = scalar_select 0, %s5, %s3
  $region1: #{tpu_custom_call.1} parent=0
    #allocation2 [shape = 'u8[65536]{0}', space=vmem, size = 0x10000, scoped, tag = 'input window, operand 1']
    #allocation3 [shape = 's32[2]{0}', space=sflag, size = 0x8, scoped, tag = 'scoped memory for tpu_custom_call.1']
    #allocation4 [shape = 's32[2]{0}', space=sflag, size = 0x8, scoped, tag = 'scoped memory for tpu_custom_call.1']
    #allocation5 [shape = 'u8[8192]{0}', space=vmem, size = 0x2000, scoped, tag = 'output window, operand 0']
    %7 = vsyncpa [#allocation3], 0
    %s8 = scalar_lea.sflag [#allocation3], 1
    %9 = vsyncpa %s8, 0
    %10 = vsyncpa [#allocation4], 0
    %s11 = scalar_lea.sflag [#allocation4], 1
    %12 = vsyncpa %s11, 0
    loop: start=0, step=1, limit=4
    $region2: #{tpu_custom_call.1} parent=1 // loop_pre_header
      _
    $region3: #{tpu_custom_call.1} parent=1 // loop_header
      %s14 = sphi 0, %s18
      %p15 = scmp.ge.s32.totalorder %s14, 4
      %s21 = sphi 0, %s33
      %s22 = sphi 0, %s29
      %s23 = sphi 0, %s21
      %s24 = sphi 0, %s22
      %s25 = sphi 0, %s23
      %s26 = sphi 0, %s24
      %s36 = sphi 0, %s38
      %s39 = sphi 0, %s36
      %s40 = sphi 0, %s39
      %s56 = sphi 0, %s40
      %s64 = sphi 0, %s66
      %s67 = sphi 0, %s64
      %s68 = sphi 0, %s67
      %s84 = sphi 0, %s68
      %s92 = sphi 0, %s94
      %s95 = sphi 0, %s92
      %s96 = sphi 0, %s95
      %s112 = sphi 0, %s96
    $region4: #{tpu_custom_call.1} parent=1 // loop_header_branch
      %17 = sbr.rel (%p15) target = $region8
    $region5: #{tpu_custom_call.1} parent=1 // loop_body
      %s19 = ssub.s32 %s14, 1
      %s20 = ssub.s32 %s14, 2
      %s27 = sadd.s32 1, %s22
      %p28 = scmp.ge.s32.totalorder %s27, 2
      %s29 = scalar_select %p28, 0, %s27
      %s30 = sadd.s32 1, %s21
      %s31 = scalar_select %p28, %s30, %s21
      %p32 = scmp.ge.s32.totalorder %s31, 1
      %s33 = scalar_select %p32, 0, %s31
      %s34 = ssub.s32 %s21, %s33
      %p35 = scmp.eq.s32.totalorder %s34, 0
      %s37 = sadd.s32 %s36, 1
      %s38 = scalar_select %p35, %s36, %s37
      %p41 = pneg %p35
      %p42 = scmp.eq.s32.totalorder %s14, 1
      %p43 = por %p41, %p42
      %p44 = scmp.ne.s32.totalorder %s36, %s39
      %p45 = scmp.eq.s32.totalorder %s14, 0
      %p46 = por %p44, %p45
      %p47 = scmp.ne.s32.totalorder %s36, %s39
      %p48 = scmp.eq.s32.totalorder %s19, 1
      %p49 = por %p47, %p48
      %p50 = scmp.ne.s32.totalorder %s39, %s40
      %p51 = scmp.eq.s32.totalorder %s19, 0
      %p52 = por %p50, %p51
      %p53 = scmp.ne.s32.totalorder %s39, %s40
      %p54 = scmp.eq.s32.totalorder %s20, 1
      %p55 = por %p53, %p54
      %p57 = scmp.ne.s32.totalorder %s40, %s56
      %p58 = scmp.eq.s32.totalorder %s20, 0
      %p59 = por %p57, %p58
      %s60 = ssub.s32 %s22, %s29
      %s61 = ssub.s32 %s21, %s33
      %s62 = sor.u32 %s60, %s61
      %p63 = scmp.eq.s32.totalorder %s62, 0
      %s65 = sadd.s32 %s64, 1
      %s66 = scalar_select %p63, %s64, %s65
      %p69 = pneg %p63
      %p70 = scmp.eq.s32.totalorder %s14, 1
      %p71 = por %p69, %p70
      %p72 = scmp.ne.s32.totalorder %s64, %s67
      %p73 = scmp.eq.s32.totalorder %s14, 0
      %p74 = por %p72, %p73
      %p75 = scmp.ne.s32.totalorder %s64, %s67
      %p76 = scmp.eq.s32.totalorder %s19, 1
      %p77 = por %p75, %p76
      %p78 = scmp.ne.s32.totalorder %s67, %s68
      %p79 = scmp.eq.s32.totalorder %s19, 0
      %p80 = por %p78, %p79
      %p81 = scmp.ne.s32.totalorder %s67, %s68
      %p82 = scmp.eq.s32.totalorder %s20, 1
      %p83 = por %p81, %p82
      %p85 = scmp.ne.s32.totalorder %s68, %s84
      %p86 = scmp.eq.s32.totalorder %s20, 0
      %p87 = por %p85, %p86
      %s88 = ssub.s32 %s21, %s33
      %s89 = ssub.s32 %s22, %s29
      %s90 = sor.u32 %s88, %s89
      %p91 = scmp.eq.s32.totalorder %s90, 0
      %s93 = sadd.s32 %s92, 1
      %s94 = scalar_select %p91, %s92, %s93
      %p97 = pneg %p91
      %p98 = scmp.eq.s32.totalorder %s14, 1
      %p99 = por %p97, %p98
      %p100 = scmp.ne.s32.totalorder %s92, %s95
      %p101 = scmp.eq.s32.totalorder %s14, 0
      %p102 = por %p100, %p101
      %p103 = scmp.ne.s32.totalorder %s92, %s95
      %p104 = scmp.eq.s32.totalorder %s19, 1
      %p105 = por %p103, %p104
      %p106 = scmp.ne.s32.totalorder %s95, %s96
      %p107 = scmp.eq.s32.totalorder %s19, 0
      %p108 = por %p106, %p107
      %p109 = scmp.ne.s32.totalorder %s95, %s96
      %p110 = scmp.eq.s32.totalorder %s20, 1
      %p111 = por %p109, %p110
      %p113 = scmp.ne.s32.totalorder %s96, %s112
      %p114 = scmp.eq.s32.totalorder %s20, 0
      %p115 = por %p113, %p114
      %p116 = scmp.le.s32.totalorder 1, %s14
      %p117 = scmp.lt.s32.totalorder %s14, 3
      %p118 = pnand %p116, %p117
      %p119 = pneg %p118
      // Predicated region
      $region9: #{tpu_custom_call.1} parent=5 // pred_check
        _
      $region10: #{tpu_custom_call.1} parent=5 // pred_check_branch
        %121 = sbr.rel (%p118) target = $region12
      $region11: #{tpu_custom_call.1} parent=5 // pred_region
        %s122 = ssub.s32 %s14, 1
        // Predicated region
        $region13: #{tpu_custom_call.1} parent=11 // pred_check
          %p123 = pneg %p52
        $region14: #{tpu_custom_call.1} parent=11 // pred_check_branch
          %125 = sbr.rel (%p123) target = $region16
        $region15: #{tpu_custom_call.1} parent=11 // pred_region
          %s126 = smul.u32 4, %s23
          %p127 = scmp.lt.s32.totalorder %s126, 3
          %s128 = scalar_select %p127, %s126, 3
          %s129 = smul.addr %s128, 2
          %s130 = smul.addr %s129, 8
          %s131 = scalar_lea.vmem %s0, %s130
          %s132 = smul.u32 4, %s23
        $region16: #{tpu_custom_call.1} parent=11 // pred_fallthru
          _
      $region12: #{tpu_custom_call.1} parent=5 // pred_fallthru
        _
      %p133 = scmp.lt.s32.totalorder %s14, 2
      // Predicated region
      $region17: #{tpu_custom_call.1} parent=5 // pred_check
        %p134 = pneg %p133
      $region18: #{tpu_custom_call.1} parent=5 // pred_check_branch
        %136 = sbr.rel (%p134) target = $region20
      $region19: #{tpu_custom_call.1} parent=5 // pred_region
        // Predicated region
        $region21: #{tpu_custom_call.1} parent=19 // pred_check
          %p137 = pneg %p74
        $region22: #{tpu_custom_call.1} parent=19 // pred_check_branch
          %139 = sbr.rel (%p137) target = $region24
        $region23: #{tpu_custom_call.1} parent=19 // pred_region
          %s140 = sand.u32 %s64, 1
          %s141 = scalar_lea.sflag [#allocation3], %s140
          %s142 = sand.u32 %s64, 1
          %s143 = smul.addr %s142, 64
          %s144 = scalar_lea.vmem [#allocation2], %s143
          %s145 = smul.u32 4, %s21
          %147 = vsyncadd %s141, 0
          %s148 = smul.addr %s145, 2
          %s149 = smul.addr %s22, 8
          %s150 = sadd.s32 %s148, %s149
          %s151 = smul.addr %s150, 8
          %s152 = scalar_lea.hbm %s1, %s151
          %s153 = sshll.u32 %s152, 4
          %s154 = int_to_ptr.hbm [resolvable:$true] %s153
          %s155 = sshll.u32 %s144, 4
          %s156 = int_to_ptr.vmem [resolvable:$true] %s155
          %161 = dma.hbm_to_vmem [thread:$0]  %s154, 1024, %s156, %s141, 128, 128, 8
        $region24: #{tpu_custom_call.1} parent=19 // pred_fallthru
          _
      $region20: #{tpu_custom_call.1} parent=5 // pred_fallthru
        _
      %p162 = scmp.le.s32.totalorder 1, %s14
      %p163 = scmp.lt.s32.totalorder %s14, 3
      %p164 = pnand %p162, %p163
      %p165 = pneg %p164
      // Predicated region
      $region25: #{tpu_custom_call.1} parent=5 // pred_check
        _
      $region26: #{tpu_custom_call.1} parent=5 // pred_check_branch
        %167 = sbr.rel (%p164) target = $region28
      $region27: #{tpu_custom_call.1} parent=5 // pred_region
        %s168 = ssub.s32 %s14, 1
        %s169 = sand.u32 %s67, 1
        %s170 = scalar_lea.sflag [#allocation3], %s169
        %s171 = sand.u32 %s67, 1
        %s172 = smul.addr %s171, 64
        %s173 = scalar_lea.vmem [#allocation2], %s172
        // Predicated region
        $region29: #{tpu_custom_call.1} parent=27 // pred_check
          %p174 = pneg %p80
        $region30: #{tpu_custom_call.1} parent=27 // pred_check_branch
          %176 = sbr.rel (%p174) target = $region32
        $region31: #{tpu_custom_call.1} parent=27 // pred_region
          %178 = dma.done %s170, 1024
        $region32: #{tpu_custom_call.1} parent=27 // pred_fallthru
          _
        %s179 = smul.u32 4, %s23
        %p180 = scmp.lt.s32.totalorder %s179, 3
        %s181 = scalar_select %p180, %s179, 3
        %s182 = smul.addr %s181, 2
        %s183 = smul.addr %s182, 8
        %s184 = scalar_lea.vmem %s0, %s183
        %p185 = pneg %p52
        %p186 = pneg %p49
        %s187 = sand.u32 %s67, 1
        %s188 = scalar_lea.sflag [#allocation3], %s187
        %s189 = sand.u32 %s67, 1
        %s190 = smul.addr %s189, 64
        %s191 = scalar_lea.vmem [#allocation2], %s190
        %p192 = pneg %p80
        %p193 = pneg %p77
        %p194 = pneg %p108
        %p195 = pneg %p105
        %s196 = sand.u32 %s95, 1
        %s197 = scalar_lea.sflag [#allocation4], %s196
        %s198 = sand.u32 %s95, 1
        %s199 = smul.addr %s198, 8
        %s200 = scalar_lea.vmem [#allocation5], %s199
        %s201 = smul.u32 4, %s23
        %p202 = scmp.lt.s32.totalorder %s201, 3
        %s203 = scalar_select %p202, %s201, 3
        %s204 = smul.addr %s203, 2
        %s205 = smul.addr %s204, 8
        %s206 = scalar_lea.vmem %s0, %s205
        %s207 = smul.u32 4, %s23
        %s208 = smul.u32 4, %s23
        %v209 = vld [vmem:[%s206] sm:$0xff]
        %v210 = vld [vmem:[%s206 + $0x8] sm:$0xff]
        %v211 = vld [vmem:[%s173] sm:$0xff]
        %v212 = vld [vmem:[%s173 + $0x8] sm:$0xff]
        %vm213 = vcmask 130048
        %v215 = vsel %vm213, %v211, 0
        %v218 = vsel %vm213, %v212, 0
        %220 = vmatpush.msra.mxu0 0.0
        %221 = vmatpush.msra.mxu0 0.0
        %222 = vmatpush.msra.mxu0 0.0
        %223 = vmatpush.msra.mxu0 0.0
        %224 = vmatpush.msra.mxu0 0.0
        %225 = vmatpush.msra.mxu0 0.0
        %226 = vmatpush.msra.mxu0 0.0
        %227 = vmatpush.msra.mxu0 0.0
        %228 = vmatpush.msra.mxu0 0.0
        %229 = vmatpush.msra.mxu0 0.0
        %230 = vmatpush.msra.mxu0 0.0
        %231 = vmatpush.msra.mxu0 0.0
        %232 = vmatpush.msra.mxu0 0.0
        %233 = vmatpush.msra.mxu0 0.0
        %234 = vmatpush.msra.mxu0 %v210
        %235 = vmatpush.msra.mxu0 %v209
        %236 = vmatmul.f32.gmra.mxu0 %v215
        %v237 = vpop.f32.mrf.mxu0
        %v238 = vadd.f32 0.0, %v237
        %239 = vmatmul.f32.gmra.mxu0 %v218
        %v240 = vpop.f32.mrf.mxu0
        %v241 = vadd.f32 0.0, %v240
        %242 = vdwg.mxu0
        %243 = vxpose.xlu0.b32.start [1/16] %v238, 128
        %244 = vxpose.xlu0.b32.cont [2/16] %v241, 128
        %245 = vxpose.xlu0.b32.cont [3/16] 0.0, 128
        %246 = vxpose.xlu0.b32.cont [4/16] 0.0, 128
        %247 = vxpose.xlu0.b32.cont [5/16] 0.0, 128
        %248 = vxpose.xlu0.b32.cont [6/16] 0.0, 128
        %249 = vxpose.xlu0.b32.cont [7/16] 0.0, 128
        %250 = vxpose.xlu0.b32.cont [8/16] 0.0, 128
        %251 = vxpose.xlu0.b32.cont [9/16] 0.0, 128
        %252 = vxpose.xlu0.b32.cont [10/16] 0.0, 128
        %253 = vxpose.xlu0.b32.cont [11/16] 0.0, 128
        %254 = vxpose.xlu0.b32.cont [12/16] 0.0, 128
        %255 = vxpose.xlu0.b32.cont [13/16] 0.0, 128
        %256 = vxpose.xlu0.b32.cont [14/16] 0.0, 128
        %257 = vxpose.xlu0.b32.cont [15/16] 0.0, 128
        %258 = vxpose.xlu0.b32.end [16/16] 0.0, 128
        %v259 = vpop.trf.xlu0
        %v260 = vpop.trf.xlu0
        %v261 = vpop.trf.xlu0
        %v262 = vpop.trf.xlu0
        %v263 = vpop.trf.xlu0
        %v264 = vpop.trf.xlu0
        %v265 = vpop.trf.xlu0
        %v266 = vpop.trf.xlu0
        %v267 = vpop.trf.xlu0
        %v268 = vpop.trf.xlu0
        %v269 = vpop.trf.xlu0
        %v270 = vpop.trf.xlu0
        %v271 = vpop.trf.xlu0
        %v272 = vpop.trf.xlu0
        %v273 = vpop.trf.xlu0
        %v274 = vpop.trf.xlu0
        %v276 = vsel %vm213, %v259, 0
        %278 = vmatpush.msra.mxu0 0.0
        %279 = vmatpush.msra.mxu0 0.0
        %280 = vmatpush.msra.mxu0 0.0
        %281 = vmatpush.msra.mxu0 0.0
        %282 = vmatpush.msra.mxu0 0.0
        %283 = vmatpush.msra.mxu0 0.0
        %284 = vmatpush.msra.mxu0 0.0
        %285 = vmatpush.msra.mxu0 0.0
        %286 = vmatpush.msra.mxu0 0.0
        %287 = vmatpush.msra.mxu0 0.0
        %288 = vmatpush.msra.mxu0 0.0
        %289 = vmatpush.msra.mxu0 0.0
        %290 = vmatpush.msra.mxu0 0.0
        %291 = vmatpush.msra.mxu0 0.0
        %292 = vmatpush.msra.mxu0 %v210
        %293 = vmatpush.msra.mxu0 %v209
        %294 = vmatmul.f32.gmra.mxu0 %v276
        %v295 = vpop.f32.mrf.mxu0
        %v296 = vadd.f32 0.0, %v295
        %297 = vdwg.mxu0
        %298 = vxpose.xlu0.b32.start [1/16] %v296, 128
        %299 = vxpose.xlu0.b32.cont [2/16] 0.0, 128
        %300 = vxpose.xlu0.b32.cont [3/16] 0.0, 128
        %301 = vxpose.xlu0.b32.cont [4/16] 0.0, 128
        %302 = vxpose.xlu0.b32.cont [5/16] 0.0, 128
        %303 = vxpose.xlu0.b32.cont [6/16] 0.0, 128
        %304 = vxpose.xlu0.b32.cont [7/16] 0.0, 128
        %305 = vxpose.xlu0.b32.cont [8/16] 0.0, 128
        %306 = vxpose.xlu0.b32.cont [9/16] 0.0, 128
        %307 = vxpose.xlu0.b32.cont [10/16] 0.0, 128
        %308 = vxpose.xlu0.b32.cont [11/16] 0.0, 128
        %309 = vxpose.xlu0.b32.cont [12/16] 0.0, 128
        %310 = vxpose.xlu0.b32.cont [13/16] 0.0, 128
        %311 = vxpose.xlu0.b32.cont [14/16] 0.0, 128
        %312 = vxpose.xlu0.b32.cont [15/16] 0.0, 128
        %313 = vxpose.xlu0.b32.end [16/16] 0.0, 128
        %v314 = vpop.trf.xlu0
        %v315 = vpop.trf.xlu0
        %v316 = vpop.trf.xlu0
        %v317 = vpop.trf.xlu0
        %v318 = vpop.trf.xlu0
        %v319 = vpop.trf.xlu0
        %v320 = vpop.trf.xlu0
        %v321 = vpop.trf.xlu0
        %v322 = vpop.trf.xlu0
        %v323 = vpop.trf.xlu0
        %v324 = vpop.trf.xlu0
        %v325 = vpop.trf.xlu0
        %v326 = vpop.trf.xlu0
        %v327 = vpop.trf.xlu0
        %v328 = vpop.trf.xlu0
        %v329 = vpop.trf.xlu0
        %s330 = scalar_lea.vmem %s206, 16
        %v331 = vld [vmem:[%s330] sm:$0xff]
        %v332 = vld [vmem:[%s330 + $0x8] sm:$0xff]
        %s333 = scalar_lea.vmem %s173, 16 [#allocation2]
        %v334 = vld [vmem:[%s333] sm:$0xff]
        %v335 = vld [vmem:[%s333 + $0x8] sm:$0xff]
        %v337 = vsel %vm213, %v334, 0
        %v340 = vsel %vm213, %v335, 0
        %342 = vmatpush.msra.mxu0 0.0
        %343 = vmatpush.msra.mxu0 0.0
        %344 = vmatpush.msra.mxu0 0.0
        %345 = vmatpush.msra.mxu0 0.0
        %346 = vmatpush.msra.mxu0 0.0
        %347 = vmatpush.msra.mxu0 0.0
        %348 = vmatpush.msra.mxu0 0.0
        %349 = vmatpush.msra.mxu0 0.0
        %350 = vmatpush.msra.mxu0 0.0
        %351 = vmatpush.msra.mxu0 0.0
        %352 = vmatpush.msra.mxu0 0.0
        %353 = vmatpush.msra.mxu0 0.0
        %354 = vmatpush.msra.mxu0 0.0
        %355 = vmatpush.msra.mxu0 0.0
        %356 = vmatpush.msra.mxu0 %v332
        %357 = vmatpush.msra.mxu0 %v331
        %358 = vmatmul.f32.gmra.mxu0 %v337
        %v359 = vpop.f32.mrf.mxu0
        %v360 = vadd.f32 0.0, %v359
        %361 = vmatmul.f32.gmra.mxu0 %v340
        %v362 = vpop.f32.mrf.mxu0
        %v363 = vadd.f32 0.0, %v362
        %364 = vdwg.mxu0
        %365 = vxpose.xlu0.b32.start [1/16] %v360, 128
        %366 = vxpose.xlu0.b32.cont [2/16] %v363, 128
        %367 = vxpose.xlu0.b32.cont [3/16] 0.0, 128
        %368 = vxpose.xlu0.b32.cont [4/16] 0.0, 128
        %369 = vxpose.xlu0.b32.cont [5/16] 0.0, 128
        %370 = vxpose.xlu0.b32.cont [6/16] 0.0, 128
        %371 = vxpose.xlu0.b32.cont [7/16] 0.0, 128
        %372 = vxpose.xlu0.b32.cont [8/16] 0.0, 128
        %373 = vxpose.xlu0.b32.cont [9/16] 0.0, 128
        %374 = vxpose.xlu0.b32.cont [10/16] 0.0, 128
        %375 = vxpose.xlu0.b32.cont [11/16] 0.0, 128
        %376 = vxpose.xlu0.b32.cont [12/16] 0.0, 128
        %377 = vxpose.xlu0.b32.cont [13/16] 0.0, 128
        %378 = vxpose.xlu0.b32.cont [14/16] 0.0, 128
        %379 = vxpose.xlu0.b32.cont [15/16] 0.0, 128
        %380 = vxpose.xlu0.b32.end [16/16] 0.0, 128
        %v381 = vpop.trf.xlu0
        %v382 = vpop.trf.xlu0
        %v383 = vpop.trf.xlu0
        %v384 = vpop.trf.xlu0
        %v385 = vpop.trf.xlu0
        %v386 = vpop.trf.xlu0
        %v387 = vpop.trf.xlu0
        %v388 = vpop.trf.xlu0
        %v389 = vpop.trf.xlu0
        %v390 = vpop.trf.xlu0
        %v391 = vpop.trf.xlu0
        %v392 = vpop.trf.xlu0
        %v393 = vpop.trf.xlu0
        %v394 = vpop.trf.xlu0
        %v395 = vpop.trf.xlu0
        %v396 = vpop.trf.xlu0
        %v398 = vsel %vm213, %v381, 0
        %400 = vmatpush.msra.mxu0 0.0
        %401 = vmatpush.msra.mxu0 0.0
        %402 = vmatpush.msra.mxu0 0.0
        %403 = vmatpush.msra.mxu0 0.0
        %404 = vmatpush.msra.mxu0 0.0
        %405 = vmatpush.msra.mxu0 0.0
        %406 = vmatpush.msra.mxu0 0.0
        %407 = vmatpush.msra.mxu0 0.0
        %408 = vmatpush.msra.mxu0 0.0
        %409 = vmatpush.msra.mxu0 0.0
        %410 = vmatpush.msra.mxu0 0.0
        %411 = vmatpush.msra.mxu0 0.0
        %412 = vmatpush.msra.mxu0 0.0
        %413 = vmatpush.msra.mxu0 0.0
        %414 = vmatpush.msra.mxu0 %v332
        %415 = vmatpush.msra.mxu0 %v331
        %416 = vmatmul.f32.gmra.mxu0 %v398
        %v417 = vpop.f32.mrf.mxu0
        %v418 = vadd.f32 0.0, %v417
        %419 = vdwg.mxu0
        %420 = vxpose.xlu0.b32.start [1/16] %v418, 128
        %421 = vxpose.xlu0.b32.cont [2/16] 0.0, 128
        %422 = vxpose.xlu0.b32.cont [3/16] 0.0, 128
        %423 = vxpose.xlu0.b32.cont [4/16] 0.0, 128
        %424 = vxpose.xlu0.b32.cont [5/16] 0.0, 128
        %425 = vxpose.xlu0.b32.cont [6/16] 0.0, 128
        %426 = vxpose.xlu0.b32.cont [7/16] 0.0, 128
        %427 = vxpose.xlu0.b32.cont [8/16] 0.0, 128
        %428 = vxpose.xlu0.b32.cont [9/16] 0.0, 128
        %429 = vxpose.xlu0.b32.cont [10/16] 0.0, 128
        %430 = vxpose.xlu0.b32.cont [11/16] 0.0, 128
        %431 = vxpose.xlu0.b32.cont [12/16] 0.0, 128
        %432 = vxpose.xlu0.b32.cont [13/16] 0.0, 128
        %433 = vxpose.xlu0.b32.cont [14/16] 0.0, 128
        %434 = vxpose.xlu0.b32.cont [15/16] 0.0, 128
        %435 = vxpose.xlu0.b32.end [16/16] 0.0, 128
        %v436 = vpop.trf.xlu0
        %v437 = vpop.trf.xlu0
        %v438 = vpop.trf.xlu0
        %v439 = vpop.trf.xlu0
        %v440 = vpop.trf.xlu0
        %v441 = vpop.trf.xlu0
        %v442 = vpop.trf.xlu0
        %v443 = vpop.trf.xlu0
        %v444 = vpop.trf.xlu0
        %v445 = vpop.trf.xlu0
        %v446 = vpop.trf.xlu0
        %v447 = vpop.trf.xlu0
        %v448 = vpop.trf.xlu0
        %v449 = vpop.trf.xlu0
        %v450 = vpop.trf.xlu0
        %v451 = vpop.trf.xlu0
        %s452 = scalar_lea.vmem %s206, 32
        %v453 = vld [vmem:[%s452] sm:$0xff]
        %v454 = vld [vmem:[%s452 + $0x8] sm:$0xff]
        %s455 = scalar_lea.vmem %s173, 32 [#allocation2]
        %v456 = vld [vmem:[%s455] sm:$0xff]
        %v457 = vld [vmem:[%s455 + $0x8] sm:$0xff]
        %v459 = vsel %vm213, %v456, 0
        %v462 = vsel %vm213, %v457, 0
        %464 = vmatpush.msra.mxu0 0.0
        %465 = vmatpush.msra.mxu0 0.0
        %466 = vmatpush.msra.mxu0 0.0
        %467 = vmatpush.msra.mxu0 0.0
        %468 = vmatpush.msra.mxu0 0.0
        %469 = vmatpush.msra.mxu0 0.0
        %470 = vmatpush.msra.mxu0 0.0
        %471 = vmatpush.msra.mxu0 0.0
        %472 = vmatpush.msra.mxu0 0.0
        %473 = vmatpush.msra.mxu0 0.0
        %474 = vmatpush.msra.mxu0 0.0
        %475 = vmatpush.msra.mxu0 0.0
        %476 = vmatpush.msra.mxu0 0.0
        %477 = vmatpush.msra.mxu0 0.0
        %478 = vmatpush.msra.mxu0 %v454
        %479 = vmatpush.msra.mxu0 %v453
        %480 = vmatmul.f32.gmra.mxu0 %v459
        %v481 = vpop.f32.mrf.mxu0
        %v482 = vadd.f32 0.0, %v481
        %483 = vmatmul.f32.gmra.mxu0 %v462
        %v484 = vpop.f32.mrf.mxu0
        %v485 = vadd.f32 0.0, %v484
        %486 = vdwg.mxu0
        %487 = vxpose.xlu0.b32.start [1/16] %v482, 128
        %488 = vxpose.xlu0.b32.cont [2/16] %v485, 128
        %489 = vxpose.xlu0.b32.cont [3/16] 0.0, 128
        %490 = vxpose.xlu0.b32.cont [4/16] 0.0, 128
        %491 = vxpose.xlu0.b32.cont [5/16] 0.0, 128
        %492 = vxpose.xlu0.b32.cont [6/16] 0.0, 128
        %493 = vxpose.xlu0.b32.cont [7/16] 0.0, 128
        %494 = vxpose.xlu0.b32.cont [8/16] 0.0, 128
        %495 = vxpose.xlu0.b32.cont [9/16] 0.0, 128
        %496 = vxpose.xlu0.b32.cont [10/16] 0.0, 128
        %497 = vxpose.xlu0.b32.cont [11/16] 0.0, 128
        %498 = vxpose.xlu0.b32.cont [12/16] 0.0, 128
        %499 = vxpose.xlu0.b32.cont [13/16] 0.0, 128
        %500 = vxpose.xlu0.b32.cont [14/16] 0.0, 128
        %501 = vxpose.xlu0.b32.cont [15/16] 0.0, 128
        %502 = vxpose.xlu0.b32.end [16/16] 0.0, 128
        %v503 = vpop.trf.xlu0
        %v504 = vpop.trf.xlu0
        %v505 = vpop.trf.xlu0
        %v506 = vpop.trf.xlu0
        %v507 = vpop.trf.xlu0
        %v508 = vpop.trf.xlu0
        %v509 = vpop.trf.xlu0
        %v510 = vpop.trf.xlu0
        %v511 = vpop.trf.xlu0
        %v512 = vpop.trf.xlu0
        %v513 = vpop.trf.xlu0
        %v514 = vpop.trf.xlu0
        %v515 = vpop.trf.xlu0
        %v516 = vpop.trf.xlu0
        %v517 = vpop.trf.xlu0
        %v518 = vpop.trf.xlu0
        %v520 = vsel %vm213, %v503, 0
        %522 = vmatpush.msra.mxu0 0.0
        %523 = vmatpush.msra.mxu0 0.0
        %524 = vmatpush.msra.mxu0 0.0
        %525 = vmatpush.msra.mxu0 0.0
        %526 = vmatpush.msra.mxu0 0.0
        %527 = vmatpush.msra.mxu0 0.0
        %528 = vmatpush.msra.mxu0 0.0
        %529 = vmatpush.msra.mxu0 0.0
        %530 = vmatpush.msra.mxu0 0.0
        %531 = vmatpush.msra.mxu0 0.0
        %532 = vmatpush.msra.mxu0 0.0
        %533 = vmatpush.msra.mxu0 0.0
        %534 = vmatpush.msra.mxu0 0.0
        %535 = vmatpush.msra.mxu0 0.0
        %536 = vmatpush.msra.mxu0 %v454
        %537 = vmatpush.msra.mxu0 %v453
        %538 = vmatmul.f32.gmra.mxu0 %v520
        %v539 = vpop.f32.mrf.mxu0
        %v540 = vadd.f32 0.0, %v539
        %541 = vdwg.mxu0
        %542 = vxpose.xlu0.b32.start [1/16] %v540, 128
        %543 = vxpose.xlu0.b32.cont [2/16] 0.0, 128
        %544 = vxpose.xlu0.b32.cont [3/16] 0.0, 128
        %545 = vxpose.xlu0.b32.cont [4/16] 0.0, 128
        %546 = vxpose.xlu0.b32.cont [5/16] 0.0, 128
        %547 = vxpose.xlu0.b32.cont [6/16] 0.0, 128
        %548 = vxpose.xlu0.b32.cont [7/16] 0.0, 128
        %549 = vxpose.xlu0.b32.cont [8/16] 0.0, 128
        %550 = vxpose.xlu0.b32.cont [9/16] 0.0, 128
        %551 = vxpose.xlu0.b32.cont [10/16] 0.0, 128
        %552 = vxpose.xlu0.b32.cont [11/16] 0.0, 128
        %553 = vxpose.xlu0.b32.cont [12/16] 0.0, 128
        %554 = vxpose.xlu0.b32.cont [13/16] 0.0, 128
        %555 = vxpose.xlu0.b32.cont [14/16] 0.0, 128
        %556 = vxpose.xlu0.b32.cont [15/16] 0.0, 128
        %557 = vxpose.xlu0.b32.end [16/16] 0.0, 128
        %v558 = vpop.trf.xlu0
        %v559 = vpop.trf.xlu0
        %v560 = vpop.trf.xlu0
        %v561 = vpop.trf.xlu0
        %v562 = vpop.trf.xlu0
        %v563 = vpop.trf.xlu0
        %v564 = vpop.trf.xlu0
        %v565 = vpop.trf.xlu0
        %v566 = vpop.trf.xlu0
        %v567 = vpop.trf.xlu0
        %v568 = vpop.trf.xlu0
        %v569 = vpop.trf.xlu0
        %v570 = vpop.trf.xlu0
        %v571 = vpop.trf.xlu0
        %v572 = vpop.trf.xlu0
        %v573 = vpop.trf.xlu0
        %s574 = scalar_lea.vmem %s206, 48
        %v575 = vld [vmem:[%s574] sm:$0xff]
        %v576 = vld [vmem:[%s574 + $0x8] sm:$0xff]
        %s577 = scalar_lea.vmem %s173, 48 [#allocation2]
        %v578 = vld [vmem:[%s577] sm:$0xff]
        %v579 = vld [vmem:[%s577 + $0x8] sm:$0xff]
        %v581 = vsel %vm213, %v578, 0
        %v584 = vsel %vm213, %v579, 0
        %586 = vmatpush.msra.mxu0 0.0
        %587 = vmatpush.msra.mxu0 0.0
        %588 = vmatpush.msra.mxu0 0.0
        %589 = vmatpush.msra.mxu0 0.0
        %590 = vmatpush.msra.mxu0 0.0
        %591 = vmatpush.msra.mxu0 0.0
        %592 = vmatpush.msra.mxu0 0.0
        %593 = vmatpush.msra.mxu0 0.0
        %594 = vmatpush.msra.mxu0 0.0
        %595 = vmatpush.msra.mxu0 0.0
        %596 = vmatpush.msra.mxu0 0.0
        %597 = vmatpush.msra.mxu0 0.0
        %598 = vmatpush.msra.mxu0 0.0
        %599 = vmatpush.msra.mxu0 0.0
        %600 = vmatpush.msra.mxu0 %v576
        %601 = vmatpush.msra.mxu0 %v575
        %602 = vmatmul.f32.gmra.mxu0 %v581
        %v603 = vpop.f32.mrf.mxu0
        %v604 = vadd.f32 0.0, %v603
        %605 = vmatmul.f32.gmra.mxu0 %v584
        %v606 = vpop.f32.mrf.mxu0
        %v607 = vadd.f32 0.0, %v606
        %608 = vdwg.mxu0
        %609 = vxpose.xlu0.b32.start [1/16] %v604, 128
        %610 = vxpose.xlu0.b32.cont [2/16] %v607, 128
        %611 = vxpose.xlu0.b32.cont [3/16] 0.0, 128
        %612 = vxpose.xlu0.b32.cont [4/16] 0.0, 128
        %613 = vxpose.xlu0.b32.cont [5/16] 0.0, 128
        %614 = vxpose.xlu0.b32.cont [6/16] 0.0, 128
        %615 = vxpose.xlu0.b32.cont [7/16] 0.0, 128
        %616 = vxpose.xlu0.b32.cont [8/16] 0.0, 128
        %617 = vxpose.xlu0.b32.cont [9/16] 0.0, 128
        %618 = vxpose.xlu0.b32.cont [10/16] 0.0, 128
        %619 = vxpose.xlu0.b32.cont [11/16] 0.0, 128
        %620 = vxpose.xlu0.b32.cont [12/16] 0.0, 128
        %621 = vxpose.xlu0.b32.cont [13/16] 0.0, 128
        %622 = vxpose.xlu0.b32.cont [14/16] 0.0, 128
        %623 = vxpose.xlu0.b32.cont [15/16] 0.0, 128
        %624 = vxpose.xlu0.b32.end [16/16] 0.0, 128
        %v625 = vpop.trf.xlu0
        %v626 = vpop.trf.xlu0
        %v627 = vpop.trf.xlu0
        %v628 = vpop.trf.xlu0
        %v629 = vpop.trf.xlu0
        %v630 = vpop.trf.xlu0
        %v631 = vpop.trf.xlu0
        %v632 = vpop.trf.xlu0
        %v633 = vpop.trf.xlu0
        %v634 = vpop.trf.xlu0
        %v635 = vpop.trf.xlu0
        %v636 = vpop.trf.xlu0
        %v637 = vpop.trf.xlu0
        %v638 = vpop.trf.xlu0
        %v639 = vpop.trf.xlu0
        %v640 = vpop.trf.xlu0
        %v642 = vsel %vm213, %v625, 0
        %644 = vmatpush.msra.mxu0 0.0
        %645 = vmatpush.msra.mxu0 0.0
        %646 = vmatpush.msra.mxu0 0.0
        %647 = vmatpush.msra.mxu0 0.0
        %648 = vmatpush.msra.mxu0 0.0
        %649 = vmatpush.msra.mxu0 0.0
        %650 = vmatpush.msra.mxu0 0.0
        %651 = vmatpush.msra.mxu0 0.0
        %652 = vmatpush.msra.mxu0 0.0
        %653 = vmatpush.msra.mxu0 0.0
        %654 = vmatpush.msra.mxu0 0.0
        %655 = vmatpush.msra.mxu0 0.0
        %656 = vmatpush.msra.mxu0 0.0
        %657 = vmatpush.msra.mxu0 0.0
        %658 = vmatpush.msra.mxu0 %v576
        %659 = vmatpush.msra.mxu0 %v575
        %660 = vmatmul.f32.gmra.mxu0 %v642
        %v661 = vpop.f32.mrf.mxu0
        %v662 = vadd.f32 0.0, %v661
        %663 = vdwg.mxu0
        %664 = vxpose.xlu0.b32.start [1/16] %v662, 128
        %665 = vxpose.xlu0.b32.cont [2/16] 0.0, 128
        %666 = vxpose.xlu0.b32.cont [3/16] 0.0, 128
        %667 = vxpose.xlu0.b32.cont [4/16] 0.0, 128
        %668 = vxpose.xlu0.b32.cont [5/16] 0.0, 128
        %669 = vxpose.xlu0.b32.cont [6/16] 0.0, 128
        %670 = vxpose.xlu0.b32.cont [7/16] 0.0, 128
        %671 = vxpose.xlu0.b32.cont [8/16] 0.0, 128
        %672 = vxpose.xlu0.b32.cont [9/16] 0.0, 128
        %673 = vxpose.xlu0.b32.cont [10/16] 0.0, 128
        %674 = vxpose.xlu0.b32.cont [11/16] 0.0, 128
        %675 = vxpose.xlu0.b32.cont [12/16] 0.0, 128
        %676 = vxpose.xlu0.b32.cont [13/16] 0.0, 128
        %677 = vxpose.xlu0.b32.cont [14/16] 0.0, 128
        %678 = vxpose.xlu0.b32.cont [15/16] 0.0, 128
        %679 = vxpose.xlu0.b32.end [16/16] 0.0, 128
        %v680 = vpop.trf.xlu0
        %v681 = vpop.trf.xlu0
        %v682 = vpop.trf.xlu0
        %v683 = vpop.trf.xlu0
        %v684 = vpop.trf.xlu0
        %v685 = vpop.trf.xlu0
        %v686 = vpop.trf.xlu0
        %v687 = vpop.trf.xlu0
        %v688 = vpop.trf.xlu0
        %v689 = vpop.trf.xlu0
        %v690 = vpop.trf.xlu0
        %v691 = vpop.trf.xlu0
        %v692 = vpop.trf.xlu0
        %v693 = vpop.trf.xlu0
        %v694 = vpop.trf.xlu0
        %v695 = vpop.trf.xlu0
        %697 = vrot.lane.b32.xlu0 %v436, 8
        %v698 = vpop.permute.xlu0 %697
        %701 = vrot.lane.b32.xlu0 %v558, 16
        %v702 = vpop.permute.xlu0 %701
        %705 = vrot.lane.b32.xlu0 %v680, 24
        %v706 = vpop.permute.xlu0 %705
        %vm708 = vcmask 64512
        %v709 = vsel %vm708, %v314, %v698
        %v710 = vsel %vm213, %v709, %v702
        %vm711 = vcmask 195584
        %v712 = vsel %vm711, %v710, %v706
        %vm713 = vcmask 261120
        %714 = vst.msk [vmem:[%s200] sm:$0xff] %vm713, %v712
        %s715 = sand.u32 %s95, 1
        %s716 = scalar_lea.sflag [#allocation4], %s715
        %s717 = sand.u32 %s95, 1
        %s718 = smul.addr %s717, 8
        %s719 = scalar_lea.vmem [#allocation5], %s718
        // Predicated region
        $region33: #{tpu_custom_call.1} parent=27 // pred_check
          %p720 = pneg %p105
        $region34: #{tpu_custom_call.1} parent=27 // pred_check_branch
          %722 = sbr.rel (%p720) target = $region36
        $region35: #{tpu_custom_call.1} parent=27 // pred_region
          %724 = vsyncadd %s716, 0
          %s725 = smul.addr %s23, 2
          %s726 = sadd.s32 %s24, %s725
          %s727 = smul.addr %s726, 8
          %s728 = scalar_lea.hbm %s2, %s727
          %s730 = sshll.u32 %s719, 4
          %s731 = int_to_ptr.vmem [resolvable:$true] %s730
          %s732 = sshll.u32 %s728, 4
          %s733 = int_to_ptr.hbm [resolvable:$true] %s732
          %735 = dma.vmem_to_hbm [thread:$0]  %s731, 128, %s733, %s716
        $region36: #{tpu_custom_call.1} parent=27 // pred_fallthru
          _
      $region28: #{tpu_custom_call.1} parent=5 // pred_fallthru
        _
      %p736 = scmp.le.s32.totalorder 2, %s14
      // Predicated region
      $region37: #{tpu_custom_call.1} parent=5 // pred_check
        %p737 = pneg %p736
      $region38: #{tpu_custom_call.1} parent=5 // pred_check_branch
        %739 = sbr.rel (%p737) target = $region40
      $region39: #{tpu_custom_call.1} parent=5 // pred_region
        %s740 = ssub.s32 %s14, 2
        // Predicated region
        $region41: #{tpu_custom_call.1} parent=39 // pred_check
          %p741 = pneg %p111
        $region42: #{tpu_custom_call.1} parent=39 // pred_check_branch
          %743 = sbr.rel (%p741) target = $region44
        $region43: #{tpu_custom_call.1} parent=39 // pred_region
          %s744 = sand.u32 %s96, 1
          %s745 = scalar_lea.sflag [#allocation4], %s744
          %s746 = sand.u32 %s96, 1
          %s747 = smul.addr %s746, 8
          %s748 = scalar_lea.vmem [#allocation5], %s747
          %750 = dma.done %s745, 128
        $region44: #{tpu_custom_call.1} parent=39 // pred_fallthru
          _
      $region40: #{tpu_custom_call.1} parent=5 // pred_fallthru
        _
    $region6: #{tpu_custom_call.1} parent=1 // loop_footer
      %s18 = sadd.s32 1, %s14
    $region7: #{tpu_custom_call.1} parent=1 // loop_footer_branch
      %13 = sbr.rel target = $region3
    $region8: #{tpu_custom_call.1} parent=1 // loop_exit
      _
    %751 = vsyncpa [#allocation3], 1
    %s752 = scalar_lea.sflag [#allocation3], 1
    %753 = vsyncpa %s752, 1
    %754 = vsyncpa [#allocation4], 1
    %s755 = scalar_lea.sflag [#allocation4], 1
    %756 = vsyncpa %s755, 1

</llo_original>
